<compile_context>
chip_gen: v6e
topology: v6e:2x2x1
jax: 0.10.0
libtpu: 0.0.40
codegen_flags: <defaults>
</compile_context>

<pallas_src>
import functools
from math import sqrt

import jax
import jax.numpy as jnp
from jax.experimental import pallas as pl
from jax.experimental.pallas import tpu as pltpu


# -----------------------------------------------------------------------------
# AdaptiveMaxPool2d bin arithmetic (identical to PyTorch's floor/ceil edges).
# -----------------------------------------------------------------------------
def _bin_edges(n, s, i):
    return (i * n) // s, -(-((i + 1) * n) // s)      # floor(i*n/s), ceil((i+1)*n/s)


def _rup(x, m):
    return -(-x // m) * m


def _divisors(n):
    out, i = set(), 1
    while i * i <= n:
        if n % i == 0:
            out.add(i)
            out.add(n // i)
        i += 1
    return sorted(out)


# -----------------------------------------------------------------------------
# Kernel
# -----------------------------------------------------------------------------
def _pyramid_bins(bin_max, out_sizes, H, W):
    """Per-bin (tb, tc) maxima in PyTorch output order (scale-major, row-major).

    Only the finest scale reads memory; any scale that divides it is a pairwise
    max of the already-reduced fine bins (exact because the floor/ceil bin edges
    of a coarse scale coincide with the union of its nested fine bins)."""
    s_fine = max(out_sizes)
    fine = [[bin_max(*_bin_edges(H, s_fine, i), *_bin_edges(W, s_fine, j))
             for j in range(s_fine)] for i in range(s_fine)]
    bins = []
    for s in out_sizes:
        if s_fine % s == 0:
            r = s_fine // s
            for i in range(s):
                for j in range(s):
                    m = fine[i * r][j * r]
                    for di in range(r):
                        for dj in range(r):
                            if di or dj:
                                m = jnp.maximum(m, fine[i * r + di][j * r + dj])
                    bins.append(m)
        else:  # non-nesting scale: slice memory directly
            for i in range(s):
                h0, h1 = _bin_edges(H, s, i)
                for j in range(s):
                    w0, w1 = _bin_edges(W, s, j)
                    bins.append(bin_max(h0, h1, w0, w1))
    return bins


def _spp_kernel(x_ref, o_ref, *, out_sizes):
    # x_ref: (tb, H, W, tc) channels-last tile; o_ref: (tb, total, tc).
    # W reduce = sublane/XLU, H reduce = cross-vreg VPU max, C stays on the 128 lanes.
    H, W = x_ref.shape[1], x_ref.shape[2]
    bins = _pyramid_bins(
        lambda h0, h1, w0, w1: jnp.max(x_ref[:, h0:h1, w0:w1, :], axis=(1, 2)),
        out_sizes, H, W)
    # One lane-dense store per grid step instead of `total` masked row stores.
    o_ref[...] = jnp.stack(bins, axis=1).astype(o_ref.dtype)


# -----------------------------------------------------------------------------
# Generation-aware budgets & tiling
# -----------------------------------------------------------------------------
def _hw_info():
    """(physical VMEM bytes, TensorCores fed by a 'parallel' grid), safe fallbacks."""
    vmem = cores = None
    try:
        info = pltpu.get_tpu_info()
        vmem = getattr(info, "vmem_capacity_bytes", None)
        for a in ("num_tensorcores", "tensorcores_per_chip", "num_cores", "core_count"):
            v = getattr(info, a, None)
            if v:
                cores = int(v)
                break
    except Exception:
        pass
    if vmem is None or cores is None:
        try:
            kind = jax.devices()[0].device_kind.lower()
        except Exception:
            kind = ""
        single_tc = any(k in kind for k in ("v5 lite", "v5e", "v6 lite", "v6e"))
        if vmem is None:
            vmem = (128 << 20) if (single_tc or "v4" in kind or "v5p" in kind) else (64 << 20)
        if cores is None:
            cores = 1 if single_tc else 2   # conservative default: assume 2 TCs need feeding
    return int(vmem), int(cores)


def _choose_tiles(B, C, H, W, total, itemsize, budget, prefer_steps):
    """(tb, tc, in_block_bytes, out_block_bytes): largest-divisor tiles whose
    (8,128)-padded, double-buffered footprint fits `budget`, preferring >=
    `prefer_steps` grid steps while blocks stay above the ~2 MiB efficiency knee."""
    if C % 128 == 0:
        tc_cands = [d for d in _divisors(C) if d % 128 == 0]
    else:
        tc_cands = [C]          # last block dim must be a 128-multiple or the full dim

    def in_b(tb, tc):
        return tb * H * _rup(W, 8) * _rup(tc, 128) * itemsize

    def out_b(tb, tc):
        return tb * _rup(total, 8) * _rup(tc, 128) * itemsize

    def fits(tb, tc):
        return 2 * (in_b(tb, tc) + out_b(tb, tc)) <= budget

    pairs = [(tb, tc) for tb in _divisors(B) for tc in tc_cands if fits(tb, tc)]
    if not pairs:
        # TODO(synk): H-tiled grid axis + VMEM max-accumulator for giant spatial inputs.
        tb, tc = 1, min(tc_cands)
        return tb, tc, in_b(tb, tc), out_b(tb, tc)

    min_eff_block = 2 << 20     # below this, splitting for core-parallelism costs more than it buys

    def rank(p):
        tb, tc = p
        blk = in_b(tb, tc)
        nsteps = (B // tb) * (C // tc)
        feeds_all_cores = nsteps >= prefer_steps or blk < min_eff_block
        return (feeds_all_cores, blk, nsteps)

    tb, tc = max(pairs, key=rank)
    return tb, tc, in_b(tb, tc), out_b(tb, tc)


# -----------------------------------------------------------------------------
# Wrapper
# -----------------------------------------------------------------------------
def spatial_pyramid_pool(x, num_pools=(1, 4, 16), *, data_format="NCHW",
                         channels_last_output=False):
    """SpatialPyramidPool forward. Returns (B, C, sum(num_pools)) like the PyTorch
    module, or (B, sum(num_pools), C) when channels_last_output=True."""
    if data_format == "NCHW":
        B, C, H, W = x.shape
        x_cl = jnp.transpose(x, (0, 2, 3, 1))     # folded into the fetch via input fusion
    elif data_format == "NHWC":
        B, H, W, C = x.shape
        x_cl = x
    else:
        raise ValueError(f"unsupported data_format: {data_format}")

    out_sizes = tuple(int(sqrt(p)) for p in num_pools)   # mirrors PyTorch int(sqrt(p))
    total = sum(s * s for s in out_sizes)
    itemsize = jnp.dtype(x.dtype).itemsize

    phys_vmem, cores = _hw_info()
    budget = min(3 * phys_vmem // 4, 80 << 20)    # never budget past ~75% of physical
    prefer_steps = cores                          # only multi-TC chips need >= 2 steps

    # Large unaligned C: pad channels to a 128 multiple rather than one giant full-C
    # block (channels are independent, padded ones are sliced away afterwards).
    C_work = C
    if C % 128 != 0:
        full_blk = (H * _rup(W, 8) + _rup(total, 8)) * _rup(C, 128) * itemsize
        if 2 * full_blk > budget:
            C_work = _rup(C, 128)
            x_cl = jnp.pad(x_cl, ((0, 0), (0, 0), (0, 0), (0, C_work - C)))

    tb, tc, in_blk, out_blk = _choose_tiles(B, C_work, H, W, total, itemsize,
                                            budget, prefer_steps)
    nsteps = (B // tb) * (C_work // tc)

    # Deep pipeline only when B/C divisibility forces tiny blocks over many steps.
    deep_pipe = nsteps >= 64 and in_blk < (1 << 20)
    spec_kwargs = {"pipeline_mode": pl.Buffered(3)} if deep_pipe else {}
    needed = (3 if deep_pipe else 2) * in_blk + 2 * out_blk
    vmem_limit = int(min(max(needed + (2 << 20), 32 << 20), phys_vmem - (8 << 20)))

    kernel = functools.partial(_spp_kernel, out_sizes=out_sizes)
    out_cl = pl.pallas_call(
        kernel,
        out_shape=jax.ShapeDtypeStruct((B, total, C_work), x.dtype),
        grid=(B // tb, C_work // tc),
        in_specs=[pl.BlockSpec((tb, H, W, tc), lambda b, c: (b, 0, 0, c), **spec_kwargs)],
        out_specs=pl.BlockSpec((tb, total, tc), lambda b, c: (b, 0, c)),
        compiler_params=pltpu.CompilerParams(
            dimension_semantics=("parallel", "parallel"),
            vmem_limit_bytes=vmem_limit,
            allow_input_fusion=[True]),
    )(x_cl)

    out_cl = out_cl[:, :, :C]                      # drop channel padding (if any)
    if channels_last_output:
        return out_cl                              # (B, total, C): no output relayout
    return jnp.transpose(out_cl, (0, 2, 1))        # PyTorch layout (B, C, total)


# -----------------------------------------------------------------------------
# Pure-JAX reference & self-test
# -----------------------------------------------------------------------------
def _reference_spp(x, num_pools=(1, 4, 16)):
    """AdaptiveMaxPool2d pyramid with floor/ceil bin edges, NCHW in, (B, C, total) out."""
    B, C, H, W = x.shape
    outs = []
    for p in num_pools:
        s = int(sqrt(p))
        cols = []
        for i in range(s):
            h0, h1 = _bin_edges(H, s, i)
            for j in range(s):
                w0, w1 = _bin_edges(W, s, j)
                cols.append(jnp.max(x[:, :, h0:h1, w0:w1], axis=(2, 3)))
        outs.append(jnp.stack(cols, axis=-1))
    return jnp.concatenate(outs, axis=2)


if __name__ == "__main__":
    key = jax.random.PRNGKey(0)
    k1, k2 = jax.random.split(key)
    spp = jax.jit(spatial_pyramid_pool)

    # Small shape consistent with the module: (B, C, H, W) = (2, 4, 16, 16).
    x = jax.random.normal(k1, (2, 4, 16, 16), dtype=jnp.float32)
    out = jax.block_until_ready(spp(x))
    assert out.shape == (2, 4, 21), out.shape
    assert jnp.allclose(out, _reference_spp(x)), "mismatch vs reference (small case)"

    # 128-aligned channel count: exercises the multi-step parallel grid / 128-wide tc tiles.
    x2 = jax.random.normal(k2, (4, 256, 32, 32), dtype=jnp.float32)
    out2 = jax.block_until_ready(spp(x2))
    assert out2.shape == (4, 256, 21), out2.shape
    assert jnp.allclose(out2, _reference_spp(x2)), "mismatch vs reference (aligned-C case)"

    print("KERNEL_OK")
</pallas_src>

<mosaic_0001>
module attributes {stable_mosaic.version = 11 : i64} {
  func.func @_spp_kernel(%arg0: i32, %arg1: i32, %arg2: memref<2x16x16x4xf32, #tpu.memory_space<vmem>>, %arg3: memref<2x21x4xf32, #tpu.memory_space<vmem>>) attributes {dimension_semantics = [#tpu.dimension_semantics<parallel>, #tpu.dimension_semantics<parallel>], iteration_bounds = array<i64: 1, 1>, scalar_prefetch = 0 : i64, scratch_operands = 0 : i64, tpu.core_type = #tpu.core_type<tc>, window_params = [{transform_indices = @transform_0, window_bounds = array<i64: 2, 16, 16, 4>}, {transform_indices = @transform_1, window_bounds = array<i64: 2, 21, 4>}]} {
    %c0 = arith.constant 0 : index
    %c0_0 = arith.constant 0 : index
    %c0_1 = arith.constant 0 : index
    %c0_2 = arith.constant 0 : index
    %0 = vector.load %arg2[%c0, %c0_0, %c0_1, %c0_2] : memref<2x16x16x4xf32, #tpu.memory_space<vmem>>, vector<2x4x4x4xf32>
    %cst = arith.constant dense<0xFF800000> : vector<2x4xf32>
    %1 = vector.multi_reduction <maximumf>, %0, %cst [1, 2] : vector<2x4x4x4xf32> to vector<2x4xf32>
    %c0_3 = arith.constant 0 : index
    %c0_4 = arith.constant 0 : index
    %c4 = arith.constant 4 : index
    %c0_5 = arith.constant 0 : index
    %2 = vector.load %arg2[%c0_3, %c0_4, %c4, %c0_5] : memref<2x16x16x4xf32, #tpu.memory_space<vmem>>, vector<2x4x4x4xf32>
    %cst_6 = arith.constant dense<0xFF800000> : vector<2x4xf32>
    %3 = vector.multi_reduction <maximumf>, %2, %cst_6 [1, 2] : vector<2x4x4x4xf32> to vector<2x4xf32>
    %c0_7 = arith.constant 0 : index
    %c0_8 = arith.constant 0 : index
    %c8 = arith.constant 8 : index
    %c0_9 = arith.constant 0 : index
    %4 = vector.load %arg2[%c0_7, %c0_8, %c8, %c0_9] : memref<2x16x16x4xf32, #tpu.memory_space<vmem>>, vector<2x4x4x4xf32>
    %cst_10 = arith.constant dense<0xFF800000> : vector<2x4xf32>
    %5 = vector.multi_reduction <maximumf>, %4, %cst_10 [1, 2] : vector<2x4x4x4xf32> to vector<2x4xf32>
    %c0_11 = arith.constant 0 : index
    %c0_12 = arith.constant 0 : index
    %c12 = arith.constant 12 : index
    %c0_13 = arith.constant 0 : index
    %6 = vector.load %arg2[%c0_11, %c0_12, %c12, %c0_13] : memref<2x16x16x4xf32, #tpu.memory_space<vmem>>, vector<2x4x4x4xf32>
    %cst_14 = arith.constant dense<0xFF800000> : vector<2x4xf32>
    %7 = vector.multi_reduction <maximumf>, %6, %cst_14 [1, 2] : vector<2x4x4x4xf32> to vector<2x4xf32>
    %c0_15 = arith.constant 0 : index
    %c4_16 = arith.constant 4 : index
    %c0_17 = arith.constant 0 : index
    %c0_18 = arith.constant 0 : index
    %8 = vector.load %arg2[%c0_15, %c4_16, %c0_17, %c0_18] : memref<2x16x16x4xf32, #tpu.memory_space<vmem>>, vector<2x4x4x4xf32>
    %cst_19 = arith.constant dense<0xFF800000> : vector<2x4xf32>
    %9 = vector.multi_reduction <maximumf>, %8, %cst_19 [1, 2] : vector<2x4x4x4xf32> to vector<2x4xf32>
    %c0_20 = arith.constant 0 : index
    %c4_21 = arith.constant 4 : index
    %c4_22 = arith.constant 4 : index
    %c0_23 = arith.constant 0 : index
    %10 = vector.load %arg2[%c0_20, %c4_21, %c4_22, %c0_23] : memref<2x16x16x4xf32, #tpu.memory_space<vmem>>, vector<2x4x4x4xf32>
    %cst_24 = arith.constant dense<0xFF800000> : vector<2x4xf32>
    %11 = vector.multi_reduction <maximumf>, %10, %cst_24 [1, 2] : vector<2x4x4x4xf32> to vector<2x4xf32>
    %c0_25 = arith.constant 0 : index
    %c4_26 = arith.constant 4 : index
    %c8_27 = arith.constant 8 : index
    %c0_28 = arith.constant 0 : index
    %12 = vector.load %arg2[%c0_25, %c4_26, %c8_27, %c0_28] : memref<2x16x16x4xf32, #tpu.memory_space<vmem>>, vector<2x4x4x4xf32>
    %cst_29 = arith.constant dense<0xFF800000> : vector<2x4xf32>
    %13 = vector.multi_reduction <maximumf>, %12, %cst_29 [1, 2] : vector<2x4x4x4xf32> to vector<2x4xf32>
    %c0_30 = arith.constant 0 : index
    %c4_31 = arith.constant 4 : index
    %c12_32 = arith.constant 12 : index
    %c0_33 = arith.constant 0 : index
    %14 = vector.load %arg2[%c0_30, %c4_31, %c12_32, %c0_33] : memref<2x16x16x4xf32, #tpu.memory_space<vmem>>, vector<2x4x4x4xf32>
    %cst_34 = arith.constant dense<0xFF800000> : vector<2x4xf32>
    %15 = vector.multi_reduction <maximumf>, %14, %cst_34 [1, 2] : vector<2x4x4x4xf32> to vector<2x4xf32>
    %c0_35 = arith.constant 0 : index
    %c8_36 = arith.constant 8 : index
    %c0_37 = arith.constant 0 : index
    %c0_38 = arith.constant 0 : index
    %16 = vector.load %arg2[%c0_35, %c8_36, %c0_37, %c0_38] : memref<2x16x16x4xf32, #tpu.memory_space<vmem>>, vector<2x4x4x4xf32>
    %cst_39 = arith.constant dense<0xFF800000> : vector<2x4xf32>
    %17 = vector.multi_reduction <maximumf>, %16, %cst_39 [1, 2] : vector<2x4x4x4xf32> to vector<2x4xf32>
    %c0_40 = arith.constant 0 : index
    %c8_41 = arith.constant 8 : index
    %c4_42 = arith.constant 4 : index
    %c0_43 = arith.constant 0 : index
    %18 = vector.load %arg2[%c0_40, %c8_41, %c4_42, %c0_43] : memref<2x16x16x4xf32, #tpu.memory_space<vmem>>, vector<2x4x4x4xf32>
    %cst_44 = arith.constant dense<0xFF800000> : vector<2x4xf32>
    %19 = vector.multi_reduction <maximumf>, %18, %cst_44 [1, 2] : vector<2x4x4x4xf32> to vector<2x4xf32>
    %c0_45 = arith.constant 0 : index
    %c8_46 = arith.constant 8 : index
    %c8_47 = arith.constant 8 : index
    %c0_48 = arith.constant 0 : index
    %20 = vector.load %arg2[%c0_45, %c8_46, %c8_47, %c0_48] : memref<2x16x16x4xf32, #tpu.memory_space<vmem>>, vector<2x4x4x4xf32>
    %cst_49 = arith.constant dense<0xFF800000> : vector<2x4xf32>
    %21 = vector.multi_reduction <maximumf>, %20, %cst_49 [1, 2] : vector<2x4x4x4xf32> to vector<2x4xf32>
    %c0_50 = arith.constant 0 : index
    %c8_51 = arith.constant 8 : index
    %c12_52 = arith.constant 12 : index
    %c0_53 = arith.constant 0 : index
    %22 = vector.load %arg2[%c0_50, %c8_51, %c12_52, %c0_53] : memref<2x16x16x4xf32, #tpu.memory_space<vmem>>, vector<2x4x4x4xf32>
    %cst_54 = arith.constant dense<0xFF800000> : vector<2x4xf32>
    %23 = vector.multi_reduction <maximumf>, %22, %cst_54 [1, 2] : vector<2x4x4x4xf32> to vector<2x4xf32>
    %c0_55 = arith.constant 0 : index
    %c12_56 = arith.constant 12 : index
    %c0_57 = arith.constant 0 : index
    %c0_58 = arith.constant 0 : index
    %24 = vector.load %arg2[%c0_55, %c12_56, %c0_57, %c0_58] : memref<2x16x16x4xf32, #tpu.memory_space<vmem>>, vector<2x4x4x4xf32>
    %cst_59 = arith.constant dense<0xFF800000> : vector<2x4xf32>
    %25 = vector.multi_reduction <maximumf>, %24, %cst_59 [1, 2] : vector<2x4x4x4xf32> to vector<2x4xf32>
    %c0_60 = arith.constant 0 : index
    %c12_61 = arith.constant 12 : index
    %c4_62 = arith.constant 4 : index
    %c0_63 = arith.constant 0 : index
    %26 = vector.load %arg2[%c0_60, %c12_61, %c4_62, %c0_63] : memref<2x16x16x4xf32, #tpu.memory_space<vmem>>, vector<2x4x4x4xf32>
    %cst_64 = arith.constant dense<0xFF800000> : vector<2x4xf32>
    %27 = vector.multi_reduction <maximumf>, %26, %cst_64 [1, 2] : vector<2x4x4x4xf32> to vector<2x4xf32>
    %c0_65 = arith.constant 0 : index
    %c12_66 = arith.constant 12 : index
    %c8_67 = arith.constant 8 : index
    %c0_68 = arith.constant 0 : index
    %28 = vector.load %arg2[%c0_65, %c12_66, %c8_67, %c0_68] : memref<2x16x16x4xf32, #tpu.memory_space<vmem>>, vector<2x4x4x4xf32>
    %cst_69 = arith.constant dense<0xFF800000> : vector<2x4xf32>
    %29 = vector.multi_reduction <maximumf>, %28, %cst_69 [1, 2] : vector<2x4x4x4xf32> to vector<2x4xf32>
    %c0_70 = arith.constant 0 : index
    %c12_71 = arith.constant 12 : index
    %c12_72 = arith.constant 12 : index
    %c0_73 = arith.constant 0 : index
    %30 = vector.load %arg2[%c0_70, %c12_71, %c12_72, %c0_73] : memref<2x16x16x4xf32, #tpu.memory_space<vmem>>, vector<2x4x4x4xf32>
    %cst_74 = arith.constant dense<0xFF800000> : vector<2x4xf32>
    %31 = vector.multi_reduction <maximumf>, %30, %cst_74 [1, 2] : vector<2x4x4x4xf32> to vector<2x4xf32>
    %32 = arith.maximumf %1, %3 : vector<2x4xf32>
    %33 = arith.maximumf %32, %5 : vector<2x4xf32>
    %34 = arith.maximumf %33, %7 : vector<2x4xf32>
    %35 = arith.maximumf %34, %9 : vector<2x4xf32>
    %36 = arith.maximumf %35, %11 : vector<2x4xf32>
    %37 = arith.maximumf %36, %13 : vector<2x4xf32>
    %38 = arith.maximumf %37, %15 : vector<2x4xf32>
    %39 = arith.maximumf %38, %17 : vector<2x4xf32>
    %40 = arith.maximumf %39, %19 : vector<2x4xf32>
    %41 = arith.maximumf %40, %21 : vector<2x4xf32>
    %42 = arith.maximumf %41, %23 : vector<2x4xf32>
    %43 = arith.maximumf %42, %25 : vector<2x4xf32>
    %44 = arith.maximumf %43, %27 : vector<2x4xf32>
    %45 = arith.maximumf %44, %29 : vector<2x4xf32>
    %46 = arith.maximumf %45, %31 : vector<2x4xf32>
    %47 = arith.maximumf %1, %3 : vector<2x4xf32>
    %48 = arith.maximumf %47, %9 : vector<2x4xf32>
    %49 = arith.maximumf %48, %11 : vector<2x4xf32>
    %50 = arith.maximumf %5, %7 : vector<2x4xf32>
    %51 = arith.maximumf %50, %13 : vector<2x4xf32>
    %52 = arith.maximumf %51, %15 : vector<2x4xf32>
    %53 = arith.maximumf %17, %19 : vector<2x4xf32>
    %54 = arith.maximumf %53, %25 : vector<2x4xf32>
    %55 = arith.maximumf %54, %27 : vector<2x4xf32>
    %56 = arith.maximumf %21, %23 : vector<2x4xf32>
    %57 = arith.maximumf %56, %29 : vector<2x4xf32>
    %58 = arith.maximumf %57, %31 : vector<2x4xf32>
    %59 = vector.shape_cast %46 : vector<2x4xf32> to vector<2x1x4xf32>
    %60 = vector.shape_cast %49 : vector<2x4xf32> to vector<2x1x4xf32>
    %61 = vector.shape_cast %52 : vector<2x4xf32> to vector<2x1x4xf32>
    %62 = vector.shape_cast %55 : vector<2x4xf32> to vector<2x1x4xf32>
    %63 = vector.shape_cast %58 : vector<2x4xf32> to vector<2x1x4xf32>
    %64 = vector.shape_cast %1 : vector<2x4xf32> to vector<2x1x4xf32>
    %65 = vector.shape_cast %3 : vector<2x4xf32> to vector<2x1x4xf32>
    %66 = vector.shape_cast %5 : vector<2x4xf32> to vector<2x1x4xf32>
    %67 = vector.shape_cast %7 : vector<2x4xf32> to vector<2x1x4xf32>
    %68 = vector.shape_cast %9 : vector<2x4xf32> to vector<2x1x4xf32>
    %69 = vector.shape_cast %11 : vector<2x4xf32> to vector<2x1x4xf32>
    %70 = vector.shape_cast %13 : vector<2x4xf32> to vector<2x1x4xf32>
    %71 = vector.shape_cast %15 : vector<2x4xf32> to vector<2x1x4xf32>
    %72 = vector.shape_cast %17 : vector<2x4xf32> to vector<2x1x4xf32>
    %73 = vector.shape_cast %19 : vector<2x4xf32> to vector<2x1x4xf32>
    %74 = vector.shape_cast %21 : vector<2x4xf32> to vector<2x1x4xf32>
    %75 = vector.shape_cast %23 : vector<2x4xf32> to vector<2x1x4xf32>
    %76 = vector.shape_cast %25 : vector<2x4xf32> to vector<2x1x4xf32>
    %77 = vector.shape_cast %27 : vector<2x4xf32> to vector<2x1x4xf32>
    %78 = vector.shape_cast %29 : vector<2x4xf32> to vector<2x1x4xf32>
    %79 = vector.shape_cast %31 : vector<2x4xf32> to vector<2x1x4xf32>
    %80 = tpu.concatenate %59, %60, %61, %62, %63, %64, %65, %66, %67, %68, %69, %70, %71, %72, %73, %74 in 1 : vector<2x1x4xf32>, vector<2x1x4xf32>, vector<2x1x4xf32>, vector<2x1x4xf32>, vector<2x1x4xf32>, vector<2x1x4xf32>, vector<2x1x4xf32>, vector<2x1x4xf32>, vector<2x1x4xf32>, vector<2x1x4xf32>, vector<2x1x4xf32>, vector<2x1x4xf32>, vector<2x1x4xf32>, vector<2x1x4xf32>, vector<2x1x4xf32>, vector<2x1x4xf32> -> vector<2x16x4xf32>
    %81 = tpu.concatenate %75, %76, %77, %78, %79 in 1 : vector<2x1x4xf32>, vector<2x1x4xf32>, vector<2x1x4xf32>, vector<2x1x4xf32>, vector<2x1x4xf32> -> vector<2x5x4xf32>
    %82 = tpu.concatenate %80, %81 in 1 : vector<2x16x4xf32>, vector<2x5x4xf32> -> vector<2x21x4xf32>
    %c0_75 = arith.constant 0 : index
    %c0_76 = arith.constant 0 : index
    %c0_77 = arith.constant 0 : index
    %83 = vector.load %arg3[%c0_75, %c0_76, %c0_77] : memref<2x21x4xf32, #tpu.memory_space<vmem>>, vector<2x21x4xf32>
    tpu.vector_store %arg3[%c0_75, %c0_76, %c0_77], %82 {strides = array<i32>} : memref<2x21x4xf32, #tpu.memory_space<vmem>>, vector<2x21x4xf32>,
    return
  }
  func.func @transform_0(%arg0: i32, %arg1: i32) -> (i32, i32, i32, i32) {
    %c0_i32 = arith.constant 0 : i32
    %c0_i32_0 = arith.constant 0 : i32
    %c0_i32_1 = arith.constant 0 : i32
    return %arg0, %c0_i32, %c0_i32_0, %arg1 : i32, i32, i32, i32
  }
  func.func @transform_1(%arg0: i32, %arg1: i32) -> (i32, i32, i32) {
    %c0_i32 = arith.constant 0 : i32
    %c0_i32_0 = arith.constant 0 : i32
    return %arg0, %c0_i32, %arg1 : i32, i32, i32
  }
}

</mosaic_0001>

<llo_original>
// kernel: spatial_pyramid_pool.2
$region0: #{spatial_pyramid_pool.2}
  #allocation0 [shape = 'u32[]', space=smem, size = 0x4, offset = 0x4, fixed_abs, tag = 'smem constant byte address 0x4 - core index']
  #allocation1 [shape = 'u32[144,128]{1,0:T(1,128)}', space=vmem, size = 0x12000, scoped, tag = 'internal scratch']
  %s0 = inlined_call_operand.vmem [shape: f32[2,4,16,16], index: 0, kind: input, shape index: {}]
  %s1 = inlined_call_operand.vmem [shape: f32[2,21,4], index: 1, kind: output, shape index: {}]
  %s2 = sld [smem:[#allocation0]]
  $region14: #{spatial_pyramid_pool.2} parent=0
    _
  %s4 = ssub.s32 1, %s2
  %s5 = scalar_select 0, %s4, %s2
  $region1: #{spatial_pyramid_pool.2} parent=0
    #allocation2 [shape = 'u8[262144]{0}', space=vmem, size = 0x40000, dematerialized = true, scoped, tag = 'FusionAdapter Buffer %fusion.1 = f32[2,16,16,4]{3,2,1,0:T(8,128)} fusion(%param_0.1), kind=kLoop, calls=%fused_computation.1.clone, metadata={op_name="jit(spatial_pyramid_pool)/transpose" stack_frame_id=7}']
    // Predicated region
    $region2: #{spatial_pyramid_pool.2} parent=1 // pred_check
      _
    $region3: #{spatial_pyramid_pool.2} parent=1 // pred_check_branch
      %7 = sbr.rel (0) target = $region5
    $region4: #{spatial_pyramid_pool.2} parent=1 // pred_region
      _
    $region5: #{spatial_pyramid_pool.2} parent=1 // pred_fallthru
      _
    %v8 = vld [vmem:[%s0] sm:$0xff]
    %s10 = ssub.s32 256, 1
    %11 = vst [vmem:[#allocation2] sm:%s10] %v8
    %s12 = scalar_lea.vmem %s0, 8
    %v13 = vld [vmem:[%s12] sm:$0xff]
    %s14 = scalar_lea.vmem [#allocation2], 8
    %s16 = ssub.s32 256, 1
    %17 = vst [vmem:[%s14] sm:%s16] %v13
    %s18 = scalar_lea.vmem %s0, 16
    %v19 = vld [vmem:[%s18] sm:$0xff]
    %s20 = scalar_lea.vmem [#allocation2], 16
    %s22 = ssub.s32 256, 1
    %23 = vst [vmem:[%s20] sm:%s22] %v19
    %s24 = scalar_lea.vmem %s0, 24
    %v25 = vld [vmem:[%s24] sm:$0xff]
    %s26 = scalar_lea.vmem [#allocation2], 24
    %s28 = ssub.s32 256, 1
    %29 = vst [vmem:[%s26] sm:%s28] %v25
    %s30 = scalar_lea.vmem %s0, 32
    %v31 = vld [vmem:[%s30] sm:$0xff]
    %s32 = scalar_lea.vmem [#allocation2], 32
    %s34 = ssub.s32 256, 1
    %35 = vst [vmem:[%s32] sm:%s34] %v31
    %s36 = scalar_lea.vmem %s0, 40
    %v37 = vld [vmem:[%s36] sm:$0xff]
    %s38 = scalar_lea.vmem [#allocation2], 40
    %s40 = ssub.s32 256, 1
    %41 = vst [vmem:[%s38] sm:%s40] %v37
    %s42 = scalar_lea.vmem %s0, 48
    %v43 = vld [vmem:[%s42] sm:$0xff]
    %s44 = scalar_lea.vmem [#allocation2], 48
    %s46 = ssub.s32 256, 1
    %47 = vst [vmem:[%s44] sm:%s46] %v43
    %s48 = scalar_lea.vmem %s0, 56
    %v49 = vld [vmem:[%s48] sm:$0xff]
    %s50 = scalar_lea.vmem [#allocation2], 56
    %s52 = ssub.s32 256, 1
    %53 = vst [vmem:[%s50] sm:%s52] %v49
    %s54 = scalar_lea.vmem %s0, 64
    %v55 = vld [vmem:[%s54] sm:$0xff]
    %s56 = scalar_lea.vmem [#allocation2], 64
    %s58 = ssub.s32 256, 1
    %59 = vst [vmem:[%s56] sm:%s58] %v55
    %s60 = scalar_lea.vmem %s0, 72
    %v61 = vld [vmem:[%s60] sm:$0xff]
    %s62 = scalar_lea.vmem [#allocation2], 72
    %s64 = ssub.s32 256, 1
    %65 = vst [vmem:[%s62] sm:%s64] %v61
    %s66 = scalar_lea.vmem %s0, 80
    %v67 = vld [vmem:[%s66] sm:$0xff]
    %s68 = scalar_lea.vmem [#allocation2], 80
    %s70 = ssub.s32 256, 1
    %71 = vst [vmem:[%s68] sm:%s70] %v67
    %s72 = scalar_lea.vmem %s0, 88
    %v73 = vld [vmem:[%s72] sm:$0xff]
    %s74 = scalar_lea.vmem [#allocation2], 88
    %s76 = ssub.s32 256, 1
    %77 = vst [vmem:[%s74] sm:%s76] %v73
    %s78 = scalar_lea.vmem %s0, 96
    %v79 = vld [vmem:[%s78] sm:$0xff]
    %s80 = scalar_lea.vmem [#allocation2], 96
    %s82 = ssub.s32 256, 1
    %83 = vst [vmem:[%s80] sm:%s82] %v79
    %s84 = scalar_lea.vmem %s0, 104
    %v85 = vld [vmem:[%s84] sm:$0xff]
    %s86 = scalar_lea.vmem [#allocation2], 104
    %s88 = ssub.s32 256, 1
    %89 = vst [vmem:[%s86] sm:%s88] %v85
    %s90 = scalar_lea.vmem %s0, 112
    %v91 = vld [vmem:[%s90] sm:$0xff]
    %s92 = scalar_lea.vmem [#allocation2], 112
    %s94 = ssub.s32 256, 1
    %95 = vst [vmem:[%s92] sm:%s94] %v91
    %s96 = scalar_lea.vmem %s0, 120
    %v97 = vld [vmem:[%s96] sm:$0xff]
    %s98 = scalar_lea.vmem [#allocation2], 120
    %s100 = ssub.s32 256, 1
    %101 = vst [vmem:[%s98] sm:%s100] %v97
    %s102 = scalar_lea.vmem %s0, 128
    %v103 = vld [vmem:[%s102] sm:$0xff]
    %s104 = scalar_lea.vmem [#allocation2], 128
    %s106 = ssub.s32 256, 1
    %107 = vst [vmem:[%s104] sm:%s106] %v103
    %s108 = scalar_lea.vmem %s0, 136
    %v109 = vld [vmem:[%s108] sm:$0xff]
    %s110 = scalar_lea.vmem [#allocation2], 136
    %s112 = ssub.s32 256, 1
    %113 = vst [vmem:[%s110] sm:%s112] %v109
    %s114 = scalar_lea.vmem %s0, 144
    %v115 = vld [vmem:[%s114] sm:$0xff]
    %s116 = scalar_lea.vmem [#allocation2], 144
    %s118 = ssub.s32 256, 1
    %119 = vst [vmem:[%s116] sm:%s118] %v115
    %s120 = scalar_lea.vmem %s0, 152
    %v121 = vld [vmem:[%s120] sm:$0xff]
    %s122 = scalar_lea.vmem [#allocation2], 152
    %s124 = ssub.s32 256, 1
    %125 = vst [vmem:[%s122] sm:%s124] %v121
    %s126 = scalar_lea.vmem %s0, 160
    %v127 = vld [vmem:[%s126] sm:$0xff]
    %s128 = scalar_lea.vmem [#allocation2], 160
    %s130 = ssub.s32 256, 1
    %131 = vst [vmem:[%s128] sm:%s130] %v127
    %s132 = scalar_lea.vmem %s0, 168
    %v133 = vld [vmem:[%s132] sm:$0xff]
    %s134 = scalar_lea.vmem [#allocation2], 168
    %s136 = ssub.s32 256, 1
    %137 = vst [vmem:[%s134] sm:%s136] %v133
    %s138 = scalar_lea.vmem %s0, 176
    %v139 = vld [vmem:[%s138] sm:$0xff]
    %s140 = scalar_lea.vmem [#allocation2], 176
    %s142 = ssub.s32 256, 1
    %143 = vst [vmem:[%s140] sm:%s142] %v139
    %s144 = scalar_lea.vmem %s0, 184
    %v145 = vld [vmem:[%s144] sm:$0xff]
    %s146 = scalar_lea.vmem [#allocation2], 184
    %s148 = ssub.s32 256, 1
    %149 = vst [vmem:[%s146] sm:%s148] %v145
    %s150 = scalar_lea.vmem %s0, 192
    %v151 = vld [vmem:[%s150] sm:$0xff]
    %s152 = scalar_lea.vmem [#allocation2], 192
    %s154 = ssub.s32 256, 1
    %155 = vst [vmem:[%s152] sm:%s154] %v151
    %s156 = scalar_lea.vmem %s0, 200
    %v157 = vld [vmem:[%s156] sm:$0xff]
    %s158 = scalar_lea.vmem [#allocation2], 200
    %s160 = ssub.s32 256, 1
    %161 = vst [vmem:[%s158] sm:%s160] %v157
    %s162 = scalar_lea.vmem %s0, 208
    %v163 = vld [vmem:[%s162] sm:$0xff]
    %s164 = scalar_lea.vmem [#allocation2], 208
    %s166 = ssub.s32 256, 1
    %167 = vst [vmem:[%s164] sm:%s166] %v163
    %s168 = scalar_lea.vmem %s0, 216
    %v169 = vld [vmem:[%s168] sm:$0xff]
    %s170 = scalar_lea.vmem [#allocation2], 216
    %s172 = ssub.s32 256, 1
    %173 = vst [vmem:[%s170] sm:%s172] %v169
    %s174 = scalar_lea.vmem %s0, 224
    %v175 = vld [vmem:[%s174] sm:$0xff]
    %s176 = scalar_lea.vmem [#allocation2], 224
    %s178 = ssub.s32 256, 1
    %179 = vst [vmem:[%s176] sm:%s178] %v175
    %s180 = scalar_lea.vmem %s0, 232
    %v181 = vld [vmem:[%s180] sm:$0xff]
    %s182 = scalar_lea.vmem [#allocation2], 232
    %s184 = ssub.s32 256, 1
    %185 = vst [vmem:[%s182] sm:%s184] %v181
    %s186 = scalar_lea.vmem %s0, 240
    %v187 = vld [vmem:[%s186] sm:$0xff]
    %s188 = scalar_lea.vmem [#allocation2], 240
    %s190 = ssub.s32 256, 1
    %191 = vst [vmem:[%s188] sm:%s190] %v187
    %s192 = scalar_lea.vmem %s0, 248
    %v193 = vld [vmem:[%s192] sm:$0xff]
    %s194 = scalar_lea.vmem [#allocation2], 248
    %s196 = ssub.s32 256, 1
    %197 = vst [vmem:[%s194] sm:%s196] %v193
    %s198 = scalar_lea.vmem %s0, 256
    %v199 = vld [vmem:[%s198] sm:$0xff]
    %s200 = scalar_lea.vmem [#allocation2], 256
    %s202 = ssub.s32 256, 1
    %203 = vst [vmem:[%s200] sm:%s202] %v199
    %s204 = scalar_lea.vmem %s0, 264
    %v205 = vld [vmem:[%s204] sm:$0xff]
    %s206 = scalar_lea.vmem [#allocation2], 264
    %s208 = ssub.s32 256, 1
    %209 = vst [vmem:[%s206] sm:%s208] %v205
    %s210 = scalar_lea.vmem %s0, 272
    %v211 = vld [vmem:[%s210] sm:$0xff]
    %s212 = scalar_lea.vmem [#allocation2], 272
    %s214 = ssub.s32 256, 1
    %215 = vst [vmem:[%s212] sm:%s214] %v211
    %s216 = scalar_lea.vmem %s0, 280
    %v217 = vld [vmem:[%s216] sm:$0xff]
    %s218 = scalar_lea.vmem [#allocation2], 280
    %s220 = ssub.s32 256, 1
    %221 = vst [vmem:[%s218] sm:%s220] %v217
    %s222 = scalar_lea.vmem %s0, 288
    %v223 = vld [vmem:[%s222] sm:$0xff]
    %s224 = scalar_lea.vmem [#allocation2], 288
    %s226 = ssub.s32 256, 1
    %227 = vst [vmem:[%s224] sm:%s226] %v223
    %s228 = scalar_lea.vmem %s0, 296
    %v229 = vld [vmem:[%s228] sm:$0xff]
    %s230 = scalar_lea.vmem [#allocation2], 296
    %s232 = ssub.s32 256, 1
    %233 = vst [vmem:[%s230] sm:%s232] %v229
    %s234 = scalar_lea.vmem %s0, 304
    %v235 = vld [vmem:[%s234] sm:$0xff]
    %s236 = scalar_lea.vmem [#allocation2], 304
    %s238 = ssub.s32 256, 1
    %239 = vst [vmem:[%s236] sm:%s238] %v235
    %s240 = scalar_lea.vmem %s0, 312
    %v241 = vld [vmem:[%s240] sm:$0xff]
    %s242 = scalar_lea.vmem [#allocation2], 312
    %s244 = ssub.s32 256, 1
    %245 = vst [vmem:[%s242] sm:%s244] %v241
    %s246 = scalar_lea.vmem %s0, 320
    %v247 = vld [vmem:[%s246] sm:$0xff]
    %s248 = scalar_lea.vmem [#allocation2], 320
    %s250 = ssub.s32 256, 1
    %251 = vst [vmem:[%s248] sm:%s250] %v247
    %s252 = scalar_lea.vmem %s0, 328
    %v253 = vld [vmem:[%s252] sm:$0xff]
    %s254 = scalar_lea.vmem [#allocation2], 328
    %s256 = ssub.s32 256, 1
    %257 = vst [vmem:[%s254] sm:%s256] %v253
    %s258 = scalar_lea.vmem %s0, 336
    %v259 = vld [vmem:[%s258] sm:$0xff]
    %s260 = scalar_lea.vmem [#allocation2], 336
    %s262 = ssub.s32 256, 1
    %263 = vst [vmem:[%s260] sm:%s262] %v259
    %s264 = scalar_lea.vmem %s0, 344
    %v265 = vld [vmem:[%s264] sm:$0xff]
    %s266 = scalar_lea.vmem [#allocation2], 344
    %s268 = ssub.s32 256, 1
    %269 = vst [vmem:[%s266] sm:%s268] %v265
    %s270 = scalar_lea.vmem %s0, 352
    %v271 = vld [vmem:[%s270] sm:$0xff]
    %s272 = scalar_lea.vmem [#allocation2], 352
    %s274 = ssub.s32 256, 1
    %275 = vst [vmem:[%s272] sm:%s274] %v271
    %s276 = scalar_lea.vmem %s0, 360
    %v277 = vld [vmem:[%s276] sm:$0xff]
    %s278 = scalar_lea.vmem [#allocation2], 360
    %s280 = ssub.s32 256, 1
    %281 = vst [vmem:[%s278] sm:%s280] %v277
    %s282 = scalar_lea.vmem %s0, 368
    %v283 = vld [vmem:[%s282] sm:$0xff]
    %s284 = scalar_lea.vmem [#allocation2], 368
    %s286 = ssub.s32 256, 1
    %287 = vst [vmem:[%s284] sm:%s286] %v283
    %s288 = scalar_lea.vmem %s0, 376
    %v289 = vld [vmem:[%s288] sm:$0xff]
    %s290 = scalar_lea.vmem [#allocation2], 376
    %s292 = ssub.s32 256, 1
    %293 = vst [vmem:[%s290] sm:%s292] %v289
    %s294 = scalar_lea.vmem %s0, 384
    %v295 = vld [vmem:[%s294] sm:$0xff]
    %s296 = scalar_lea.vmem [#allocation2], 384
    %s298 = ssub.s32 256, 1
    %299 = vst [vmem:[%s296] sm:%s298] %v295
    %s300 = scalar_lea.vmem %s0, 392
    %v301 = vld [vmem:[%s300] sm:$0xff]
    %s302 = scalar_lea.vmem [#allocation2], 392
    %s304 = ssub.s32 256, 1
    %305 = vst [vmem:[%s302] sm:%s304] %v301
    %s306 = scalar_lea.vmem %s0, 400
    %v307 = vld [vmem:[%s306] sm:$0xff]
    %s308 = scalar_lea.vmem [#allocation2], 400
    %s310 = ssub.s32 256, 1
    %311 = vst [vmem:[%s308] sm:%s310] %v307
    %s312 = scalar_lea.vmem %s0, 408
    %v313 = vld [vmem:[%s312] sm:$0xff]
    %s314 = scalar_lea.vmem [#allocation2], 408
    %s316 = ssub.s32 256, 1
    %317 = vst [vmem:[%s314] sm:%s316] %v313
    %s318 = scalar_lea.vmem %s0, 416
    %v319 = vld [vmem:[%s318] sm:$0xff]
    %s320 = scalar_lea.vmem [#allocation2], 416
    %s322 = ssub.s32 256, 1
    %323 = vst [vmem:[%s320] sm:%s322] %v319
    %s324 = scalar_lea.vmem %s0, 424
    %v325 = vld [vmem:[%s324] sm:$0xff]
    %s326 = scalar_lea.vmem [#allocation2], 424
    %s328 = ssub.s32 256, 1
    %329 = vst [vmem:[%s326] sm:%s328] %v325
    %s330 = scalar_lea.vmem %s0, 432
    %v331 = vld [vmem:[%s330] sm:$0xff]
    %s332 = scalar_lea.vmem [#allocation2], 432
    %s334 = ssub.s32 256, 1
    %335 = vst [vmem:[%s332] sm:%s334] %v331
    %s336 = scalar_lea.vmem %s0, 440
    %v337 = vld [vmem:[%s336] sm:$0xff]
    %s338 = scalar_lea.vmem [#allocation2], 440
    %s340 = ssub.s32 256, 1
    %341 = vst [vmem:[%s338] sm:%s340] %v337
    %s342 = scalar_lea.vmem %s0, 448
    %v343 = vld [vmem:[%s342] sm:$0xff]
    %s344 = scalar_lea.vmem [#allocation2], 448
    %s346 = ssub.s32 256, 1
    %347 = vst [vmem:[%s344] sm:%s346] %v343
    %s348 = scalar_lea.vmem %s0, 456
    %v349 = vld [vmem:[%s348] sm:$0xff]
    %s350 = scalar_lea.vmem [#allocation2], 456
    %s352 = ssub.s32 256, 1
    %353 = vst [vmem:[%s350] sm:%s352] %v349
    %s354 = scalar_lea.vmem %s0, 464
    %v355 = vld [vmem:[%s354] sm:$0xff]
    %s356 = scalar_lea.vmem [#allocation2], 464
    %s358 = ssub.s32 256, 1
    %359 = vst [vmem:[%s356] sm:%s358] %v355
    %s360 = scalar_lea.vmem %s0, 472
    %v361 = vld [vmem:[%s360] sm:$0xff]
    %s362 = scalar_lea.vmem [#allocation2], 472
    %s364 = ssub.s32 256, 1
    %365 = vst [vmem:[%s362] sm:%s364] %v361
    %s366 = scalar_lea.vmem %s0, 480
    %v367 = vld [vmem:[%s366] sm:$0xff]
    %s368 = scalar_lea.vmem [#allocation2], 480
    %s370 = ssub.s32 256, 1
    %371 = vst [vmem:[%s368] sm:%s370] %v367
    %s372 = scalar_lea.vmem %s0, 488
    %v373 = vld [vmem:[%s372] sm:$0xff]
    %s374 = scalar_lea.vmem [#allocation2], 488
    %s376 = ssub.s32 256, 1
    %377 = vst [vmem:[%s374] sm:%s376] %v373
    %s378 = scalar_lea.vmem %s0, 496
    %v379 = vld [vmem:[%s378] sm:$0xff]
    %s380 = scalar_lea.vmem [#allocation2], 496
    %s382 = ssub.s32 256, 1
    %383 = vst [vmem:[%s380] sm:%s382] %v379
    %s384 = scalar_lea.vmem %s0, 504
    %v385 = vld [vmem:[%s384] sm:$0xff]
    %s386 = scalar_lea.vmem [#allocation2], 504
    %s388 = ssub.s32 256, 1
    %389 = vst [vmem:[%s386] sm:%s388] %v385
    %v390 = vld [vmem:[#allocation2] sm:$0xf]
    %v391 = vld [vmem:[#allocation2 + $0x10] sm:$0xf]
    %v392 = vld [vmem:[#allocation2 + $0x20] sm:$0xf]
    %v393 = vld [vmem:[#allocation2 + $0x30] sm:$0xf]
    %v394 = vld [vmem:[#allocation2 + $0x100] sm:$0xf]
    %v395 = vld [vmem:[#allocation2 + $0x110] sm:$0xf]
    %v396 = vld [vmem:[#allocation2 + $0x120] sm:$0xf]
    %v397 = vld [vmem:[#allocation2 + $0x130] sm:$0xf]
    %vm398 = vcmask 27648
    %v399 = vsel %vm398, %v390, -inf
    %v400 = vsel %vm398, %v391, -inf
    %v401 = vsel %vm398, %v392, -inf
    %v402 = vmax.f32 %v399, %v401
    %v403 = vsel %vm398, %v393, -inf
    %v404 = vmax.f32 %v400, %v403
    %v405 = vmax.f32 %v402, %v404
    %v406 = vrot.slane %v405, 4
    %v407 = vmax.f32 %v405, %v406
    %v408 = vrot.slane %v407, 2
    %v409 = vmax.f32 %v407, %v408
    %v410 = vrot.slane %v409, 1
    %v411 = vmax.f32 %v409, %v410
    %v412 = vsel %vm398, %v394, -inf
    %v413 = vsel %vm398, %v395, -inf
    %v414 = vsel %vm398, %v396, -inf
    %v415 = vmax.f32 %v412, %v414
    %v416 = vsel %vm398, %v397, -inf
    %v417 = vmax.f32 %v413, %v416
    %v418 = vmax.f32 %v415, %v417
    %v419 = vrot.slane %v418, 4
    %v420 = vmax.f32 %v418, %v419
    %v421 = vrot.slane %v420, 2
    %v422 = vmax.f32 %v420, %v421
    %v423 = vrot.slane %v422, 1
    %v424 = vmax.f32 %v422, %v423
    %v425 = vld [vmem:[#allocation2 + $0x4] sm:$0xf]
    %v426 = vld [vmem:[#allocation2 + $0x14] sm:$0xf]
    %v427 = vld [vmem:[#allocation2 + $0x24] sm:$0xf]
    %v428 = vld [vmem:[#allocation2 + $0x34] sm:$0xf]
    %v429 = vld [vmem:[#allocation2 + $0x104] sm:$0xf]
    %v430 = vld [vmem:[#allocation2 + $0x114] sm:$0xf]
    %v431 = vld [vmem:[#allocation2 + $0x124] sm:$0xf]
    %v432 = vld [vmem:[#allocation2 + $0x134] sm:$0xf]
    %v433 = vsel %vm398, %v425, -inf
    %v434 = vsel %vm398, %v426, -inf
    %v435 = vsel %vm398, %v427, -inf
    %v436 = vmax.f32 %v433, %v435
    %v437 = vsel %vm398, %v428, -inf
    %v438 = vmax.f32 %v434, %v437
    %v439 = vmax.f32 %v436, %v438
    %v440 = vrot.slane %v439, 4
    %v441 = vmax.f32 %v439, %v440
    %v442 = vrot.slane %v441, 2
    %v443 = vmax.f32 %v441, %v442
    %v444 = vrot.slane %v443, 1
    %v445 = vmax.f32 %v443, %v444
    %v446 = vsel %vm398, %v429, -inf
    %v447 = vsel %vm398, %v430, -inf
    %v448 = vsel %vm398, %v431, -inf
    %v449 = vmax.f32 %v446, %v448
    %v450 = vsel %vm398, %v432, -inf
    %v451 = vmax.f32 %v447, %v450
    %v452 = vmax.f32 %v449, %v451
    %v453 = vrot.slane %v452, 4
    %v454 = vmax.f32 %v452, %v453
    %v455 = vrot.slane %v454, 2
    %v456 = vmax.f32 %v454, %v455
    %v457 = vrot.slane %v456, 1
    %v458 = vmax.f32 %v456, %v457
    %v459 = vld [vmem:[#allocation2 + $0x8] sm:$0xf]
    %v460 = vld [vmem:[#allocation2 + $0x18] sm:$0xf]
    %v461 = vld [vmem:[#allocation2 + $0x28] sm:$0xf]
    %v462 = vld [vmem:[#allocation2 + $0x38] sm:$0xf]
    %v463 = vld [vmem:[#allocation2 + $0x108] sm:$0xf]
    %v464 = vld [vmem:[#allocation2 + $0x118] sm:$0xf]
    %v465 = vld [vmem:[#allocation2 + $0x128] sm:$0xf]
    %v466 = vld [vmem:[#allocation2 + $0x138] sm:$0xf]
    %v467 = vsel %vm398, %v459, -inf
    %v468 = vsel %vm398, %v460, -inf
    %v469 = vsel %vm398, %v461, -inf
    %v470 = vmax.f32 %v467, %v469
    %v471 = vsel %vm398, %v462, -inf
    %v472 = vmax.f32 %v468, %v471
    %v473 = vmax.f32 %v470, %v472
    %v474 = vrot.slane %v473, 4
    %v475 = vmax.f32 %v473, %v474
    %v476 = vrot.slane %v475, 2
    %v477 = vmax.f32 %v475, %v476
    %v478 = vrot.slane %v477, 1
    %v479 = vmax.f32 %v477, %v478
    %v480 = vsel %vm398, %v463, -inf
    %v481 = vsel %vm398, %v464, -inf
    %v482 = vsel %vm398, %v465, -inf
    %v483 = vmax.f32 %v480, %v482
    %v484 = vsel %vm398, %v466, -inf
    %v485 = vmax.f32 %v481, %v484
    %v486 = vmax.f32 %v483, %v485
    %v487 = vrot.slane %v486, 4
    %v488 = vmax.f32 %v486, %v487
    %v489 = vrot.slane %v488, 2
    %v490 = vmax.f32 %v488, %v489
    %v491 = vrot.slane %v490, 1
    %v492 = vmax.f32 %v490, %v491
    %v493 = vld [vmem:[#allocation2 + $0xc] sm:$0xf]
    %v494 = vld [vmem:[#allocation2 + $0x1c] sm:$0xf]
    %v495 = vld [vmem:[#allocation2 + $0x2c] sm:$0xf]
    %v496 = vld [vmem:[#allocation2 + $0x3c] sm:$0xf]
    %v497 = vld [vmem:[#allocation2 + $0x10c] sm:$0xf]
    %v498 = vld [vmem:[#allocation2 + $0x11c] sm:$0xf]
    %v499 = vld [vmem:[#allocation2 + $0x12c] sm:$0xf]
    %v500 = vld [vmem:[#allocation2 + $0x13c] sm:$0xf]
    %v501 = vsel %vm398, %v493, -inf
    %v502 = vsel %vm398, %v494, -inf
    %v503 = vsel %vm398, %v495, -inf
    %v504 = vmax.f32 %v501, %v503
    %v505 = vsel %vm398, %v496, -inf
    %v506 = vmax.f32 %v502, %v505
    %v507 = vmax.f32 %v504, %v506
    %v508 = vrot.slane %v507, 4
    %v509 = vmax.f32 %v507, %v508
    %v510 = vrot.slane %v509, 2
    %v511 = vmax.f32 %v509, %v510
    %v512 = vrot.slane %v511, 1
    %v513 = vmax.f32 %v511, %v512
    %v514 = vsel %vm398, %v497, -inf
    %v515 = vsel %vm398, %v498, -inf
    %v516 = vsel %vm398, %v499, -inf
    %v517 = vmax.f32 %v514, %v516
    %v518 = vsel %vm398, %v500, -inf
    %v519 = vmax.f32 %v515, %v518
    %v520 = vmax.f32 %v517, %v519
    %v521 = vrot.slane %v520, 4
    %v522 = vmax.f32 %v520, %v521
    %v523 = vrot.slane %v522, 2
    %v524 = vmax.f32 %v522, %v523
    %v525 = vrot.slane %v524, 1
    %v526 = vmax.f32 %v524, %v525
    %s527 = scalar_lea.vmem [#allocation2], 64
    %v528 = vld [vmem:[%s527] sm:$0xf]
    %v529 = vld [vmem:[%s527 + $0x10] sm:$0xf]
    %v530 = vld [vmem:[%s527 + $0x20] sm:$0xf]
    %v531 = vld [vmem:[%s527 + $0x30] sm:$0xf]
    %v532 = vld [vmem:[%s527 + $0x100] sm:$0xf]
    %v533 = vld [vmem:[%s527 + $0x110] sm:$0xf]
    %v534 = vld [vmem:[%s527 + $0x120] sm:$0xf]
    %v535 = vld [vmem:[%s527 + $0x130] sm:$0xf]
    %v536 = vsel %vm398, %v528, -inf
    %v537 = vsel %vm398, %v529, -inf
    %v538 = vsel %vm398, %v530, -inf
    %v539 = vmax.f32 %v536, %v538
    %v540 = vsel %vm398, %v531, -inf
    %v541 = vmax.f32 %v537, %v540
    %v542 = vmax.f32 %v539, %v541
    %v543 = vrot.slane %v542, 4
    %v544 = vmax.f32 %v542, %v543
    %v545 = vrot.slane %v544, 2
    %v546 = vmax.f32 %v544, %v545
    %v547 = vrot.slane %v546, 1
    %v548 = vmax.f32 %v546, %v547
    %v549 = vsel %vm398, %v532, -inf
    %v550 = vsel %vm398, %v533, -inf
    %v551 = vsel %vm398, %v534, -inf
    %v552 = vmax.f32 %v549, %v551
    %v553 = vsel %vm398, %v535, -inf
    %v554 = vmax.f32 %v550, %v553
    %v555 = vmax.f32 %v552, %v554
    %v556 = vrot.slane %v555, 4
    %v557 = vmax.f32 %v555, %v556
    %v558 = vrot.slane %v557, 2
    %v559 = vmax.f32 %v557, %v558
    %v560 = vrot.slane %v559, 1
    %v561 = vmax.f32 %v559, %v560
    %v562 = vld [vmem:[%s527 + $0x4] sm:$0xf]
    %v563 = vld [vmem:[%s527 + $0x14] sm:$0xf]
    %v564 = vld [vmem:[%s527 + $0x24] sm:$0xf]
    %v565 = vld [vmem:[%s527 + $0x34] sm:$0xf]
    %v566 = vld [vmem:[%s527 + $0x104] sm:$0xf]
    %v567 = vld [vmem:[%s527 + $0x114] sm:$0xf]
    %v568 = vld [vmem:[%s527 + $0x124] sm:$0xf]
    %v569 = vld [vmem:[%s527 + $0x134] sm:$0xf]
    %v570 = vsel %vm398, %v562, -inf
    %v571 = vsel %vm398, %v563, -inf
    %v572 = vsel %vm398, %v564, -inf
    %v573 = vmax.f32 %v570, %v572
    %v574 = vsel %vm398, %v565, -inf
    %v575 = vmax.f32 %v571, %v574
    %v576 = vmax.f32 %v573, %v575
    %v577 = vrot.slane %v576, 4
    %v578 = vmax.f32 %v576, %v577
    %v579 = vrot.slane %v578, 2
    %v580 = vmax.f32 %v578, %v579
    %v581 = vrot.slane %v580, 1
    %v582 = vmax.f32 %v580, %v581
    %v583 = vsel %vm398, %v566, -inf
    %v584 = vsel %vm398, %v567, -inf
    %v585 = vsel %vm398, %v568, -inf
    %v586 = vmax.f32 %v583, %v585
    %v587 = vsel %vm398, %v569, -inf
    %v588 = vmax.f32 %v584, %v587
    %v589 = vmax.f32 %v586, %v588
    %v590 = vrot.slane %v589, 4
    %v591 = vmax.f32 %v589, %v590
    %v592 = vrot.slane %v591, 2
    %v593 = vmax.f32 %v591, %v592
    %v594 = vrot.slane %v593, 1
    %v595 = vmax.f32 %v593, %v594
    %v596 = vld [vmem:[%s527 + $0x8] sm:$0xf]
    %v597 = vld [vmem:[%s527 + $0x18] sm:$0xf]
    %v598 = vld [vmem:[%s527 + $0x28] sm:$0xf]
    %v599 = vld [vmem:[%s527 + $0x38] sm:$0xf]
    %v600 = vld [vmem:[%s527 + $0x108] sm:$0xf]
    %v601 = vld [vmem:[%s527 + $0x118] sm:$0xf]
    %v602 = vld [vmem:[%s527 + $0x128] sm:$0xf]
    %v603 = vld [vmem:[%s527 + $0x138] sm:$0xf]
    %v604 = vsel %vm398, %v596, -inf
    %v605 = vsel %vm398, %v597, -inf
    %v606 = vsel %vm398, %v598, -inf
    %v607 = vmax.f32 %v604, %v606
    %v608 = vsel %vm398, %v599, -inf
    %v609 = vmax.f32 %v605, %v608
    %v610 = vmax.f32 %v607, %v609
    %v611 = vrot.slane %v610, 4
    %v612 = vmax.f32 %v610, %v611
    %v613 = vrot.slane %v612, 2
    %v614 = vmax.f32 %v612, %v613
    %v615 = vrot.slane %v614, 1
    %v616 = vmax.f32 %v614, %v615
    %v617 = vsel %vm398, %v600, -inf
    %v618 = vsel %vm398, %v601, -inf
    %v619 = vsel %vm398, %v602, -inf
    %v620 = vmax.f32 %v617, %v619
    %v621 = vsel %vm398, %v603, -inf
    %v622 = vmax.f32 %v618, %v621
    %v623 = vmax.f32 %v620, %v622
    %v624 = vrot.slane %v623, 4
    %v625 = vmax.f32 %v623, %v624
    %v626 = vrot.slane %v625, 2
    %v627 = vmax.f32 %v625, %v626
    %v628 = vrot.slane %v627, 1
    %v629 = vmax.f32 %v627, %v628
    %v630 = vld [vmem:[%s527 + $0xc] sm:$0xf]
    %v631 = vld [vmem:[%s527 + $0x1c] sm:$0xf]
    %v632 = vld [vmem:[%s527 + $0x2c] sm:$0xf]
    %v633 = vld [vmem:[%s527 + $0x3c] sm:$0xf]
    %v634 = vld [vmem:[%s527 + $0x10c] sm:$0xf]
    %v635 = vld [vmem:[%s527 + $0x11c] sm:$0xf]
    %v636 = vld [vmem:[%s527 + $0x12c] sm:$0xf]
    %v637 = vld [vmem:[%s527 + $0x13c] sm:$0xf]
    %v638 = vsel %vm398, %v630, -inf
    %v639 = vsel %vm398, %v631, -inf
    %v640 = vsel %vm398, %v632, -inf
    %v641 = vmax.f32 %v638, %v640
    %v642 = vsel %vm398, %v633, -inf
    %v643 = vmax.f32 %v639, %v642
    %v644 = vmax.f32 %v641, %v643
    %v645 = vrot.slane %v644, 4
    %v646 = vmax.f32 %v644, %v645
    %v647 = vrot.slane %v646, 2
    %v648 = vmax.f32 %v646, %v647
    %v649 = vrot.slane %v648, 1
    %v650 = vmax.f32 %v648, %v649
    %v651 = vsel %vm398, %v634, -inf
    %v652 = vsel %vm398, %v635, -inf
    %v653 = vsel %vm398, %v636, -inf
    %v654 = vmax.f32 %v651, %v653
    %v655 = vsel %vm398, %v637, -inf
    %v656 = vmax.f32 %v652, %v655
    %v657 = vmax.f32 %v654, %v656
    %v658 = vrot.slane %v657, 4
    %v659 = vmax.f32 %v657, %v658
    %v660 = vrot.slane %v659, 2
    %v661 = vmax.f32 %v659, %v660
    %v662 = vrot.slane %v661, 1
    %v663 = vmax.f32 %v661, %v662
    %s664 = scalar_lea.vmem [#allocation2], 128
    %v665 = vld [vmem:[%s664] sm:$0xf]
    %v666 = vld [vmem:[%s664 + $0x10] sm:$0xf]
    %v667 = vld [vmem:[%s664 + $0x20] sm:$0xf]
    %v668 = vld [vmem:[%s664 + $0x30] sm:$0xf]
    %v669 = vld [vmem:[%s664 + $0x100] sm:$0xf]
    %v670 = vld [vmem:[%s664 + $0x110] sm:$0xf]
    %v671 = vld [vmem:[%s664 + $0x120] sm:$0xf]
    %v672 = vld [vmem:[%s664 + $0x130] sm:$0xf]
    %v673 = vsel %vm398, %v665, -inf
    %v674 = vsel %vm398, %v666, -inf
    %v675 = vsel %vm398, %v667, -inf
    %v676 = vmax.f32 %v673, %v675
    %v677 = vsel %vm398, %v668, -inf
    %v678 = vmax.f32 %v674, %v677
    %v679 = vmax.f32 %v676, %v678
    %v680 = vrot.slane %v679, 4
    %v681 = vmax.f32 %v679, %v680
    %v682 = vrot.slane %v681, 2
    %v683 = vmax.f32 %v681, %v682
    %v684 = vrot.slane %v683, 1
    %v685 = vmax.f32 %v683, %v684
    %v686 = vsel %vm398, %v669, -inf
    %v687 = vsel %vm398, %v670, -inf
    %v688 = vsel %vm398, %v671, -inf
    %v689 = vmax.f32 %v686, %v688
    %v690 = vsel %vm398, %v672, -inf
    %v691 = vmax.f32 %v687, %v690
    %v692 = vmax.f32 %v689, %v691
    %v693 = vrot.slane %v692, 4
    %v694 = vmax.f32 %v692, %v693
    %v695 = vrot.slane %v694, 2
    %v696 = vmax.f32 %v694, %v695
    %v697 = vrot.slane %v696, 1
    %v698 = vmax.f32 %v696, %v697
    %v699 = vld [vmem:[%s664 + $0x4] sm:$0xf]
    %v700 = vld [vmem:[%s664 + $0x14] sm:$0xf]
    %v701 = vld [vmem:[%s664 + $0x24] sm:$0xf]
    %v702 = vld [vmem:[%s664 + $0x34] sm:$0xf]
    %v703 = vld [vmem:[%s664 + $0x104] sm:$0xf]
    %v704 = vld [vmem:[%s664 + $0x114] sm:$0xf]
    %v705 = vld [vmem:[%s664 + $0x124] sm:$0xf]
    %v706 = vld [vmem:[%s664 + $0x134] sm:$0xf]
    %v707 = vsel %vm398, %v699, -inf
    %v708 = vsel %vm398, %v700, -inf
    %v709 = vsel %vm398, %v701, -inf
    %v710 = vmax.f32 %v707, %v709
    %v711 = vsel %vm398, %v702, -inf
    %v712 = vmax.f32 %v708, %v711
    %v713 = vmax.f32 %v710, %v712
    %v714 = vrot.slane %v713, 4
    %v715 = vmax.f32 %v713, %v714
    %v716 = vrot.slane %v715, 2
    %v717 = vmax.f32 %v715, %v716
    %v718 = vrot.slane %v717, 1
    %v719 = vmax.f32 %v717, %v718
    %v720 = vsel %vm398, %v703, -inf
    %v721 = vsel %vm398, %v704, -inf
    %v722 = vsel %vm398, %v705, -inf
    %v723 = vmax.f32 %v720, %v722
    %v724 = vsel %vm398, %v706, -inf
    %v725 = vmax.f32 %v721, %v724
    %v726 = vmax.f32 %v723, %v725
    %v727 = vrot.slane %v726, 4
    %v728 = vmax.f32 %v726, %v727
    %v729 = vrot.slane %v728, 2
    %v730 = vmax.f32 %v728, %v729
    %v731 = vrot.slane %v730, 1
    %v732 = vmax.f32 %v730, %v731
    %v733 = vld [vmem:[%s664 + $0x8] sm:$0xf]
    %v734 = vld [vmem:[%s664 + $0x18] sm:$0xf]
    %v735 = vld [vmem:[%s664 + $0x28] sm:$0xf]
    %v736 = vld [vmem:[%s664 + $0x38] sm:$0xf]
    %v737 = vld [vmem:[%s664 + $0x108] sm:$0xf]
    %v738 = vld [vmem:[%s664 + $0x118] sm:$0xf]
    %v739 = vld [vmem:[%s664 + $0x128] sm:$0xf]
    %v740 = vld [vmem:[%s664 + $0x138] sm:$0xf]
    %v741 = vsel %vm398, %v733, -inf
    %v742 = vsel %vm398, %v734, -inf
    %v743 = vsel %vm398, %v735, -inf
    %v744 = vmax.f32 %v741, %v743
    %v745 = vsel %vm398, %v736, -inf
    %v746 = vmax.f32 %v742, %v745
    %v747 = vmax.f32 %v744, %v746
    %v748 = vrot.slane %v747, 4
    %v749 = vmax.f32 %v747, %v748
    %v750 = vrot.slane %v749, 2
    %v751 = vmax.f32 %v749, %v750
    %v752 = vrot.slane %v751, 1
    %v753 = vmax.f32 %v751, %v752
    %v754 = vsel %vm398, %v737, -inf
    %v755 = vsel %vm398, %v738, -inf
    %v756 = vsel %vm398, %v739, -inf
    %v757 = vmax.f32 %v754, %v756
    %v758 = vsel %vm398, %v740, -inf
    %v759 = vmax.f32 %v755, %v758
    %v760 = vmax.f32 %v757, %v759
    %v761 = vrot.slane %v760, 4
    %v762 = vmax.f32 %v760, %v761
    %v763 = vrot.slane %v762, 2
    %v764 = vmax.f32 %v762, %v763
    %v765 = vrot.slane %v764, 1
    %v766 = vmax.f32 %v764, %v765
    %v767 = vld [vmem:[%s664 + $0xc] sm:$0xf]
    %v768 = vld [vmem:[%s664 + $0x1c] sm:$0xf]
    %v769 = vld [vmem:[%s664 + $0x2c] sm:$0xf]
    %v770 = vld [vmem:[%s664 + $0x3c] sm:$0xf]
    %v771 = vld [vmem:[%s664 + $0x10c] sm:$0xf]
    %v772 = vld [vmem:[%s664 + $0x11c] sm:$0xf]
    %v773 = vld [vmem:[%s664 + $0x12c] sm:$0xf]
    %v774 = vld [vmem:[%s664 + $0x13c] sm:$0xf]
    %v775 = vsel %vm398, %v767, -inf
    %v776 = vsel %vm398, %v768, -inf
    %v777 = vsel %vm398, %v769, -inf
    %v778 = vmax.f32 %v775, %v777
    %v779 = vsel %vm398, %v770, -inf
    %v780 = vmax.f32 %v776, %v779
    %v781 = vmax.f32 %v778, %v780
    %v782 = vrot.slane %v781, 4
    %v783 = vmax.f32 %v781, %v782
    %v784 = vrot.slane %v783, 2
    %v785 = vmax.f32 %v783, %v784
    %v786 = vrot.slane %v785, 1
    %v787 = vmax.f32 %v785, %v786
    %v788 = vsel %vm398, %v771, -inf
    %v789 = vsel %vm398, %v772, -inf
    %v790 = vsel %vm398, %v773, -inf
    %v791 = vmax.f32 %v788, %v790
    %v792 = vsel %vm398, %v774, -inf
    %v793 = vmax.f32 %v789, %v792
    %v794 = vmax.f32 %v791, %v793
    %v795 = vrot.slane %v794, 4
    %v796 = vmax.f32 %v794, %v795
    %v797 = vrot.slane %v796, 2
    %v798 = vmax.f32 %v796, %v797
    %v799 = vrot.slane %v798, 1
    %v800 = vmax.f32 %v798, %v799
    %s801 = scalar_lea.vmem [#allocation2], 192
    %v802 = vld [vmem:[%s801] sm:$0xf]
    %v803 = vld [vmem:[%s801 + $0x10] sm:$0xf]
    %v804 = vld [vmem:[%s801 + $0x20] sm:$0xf]
    %v805 = vld [vmem:[%s801 + $0x30] sm:$0xf]
    %v806 = vld [vmem:[%s801 + $0x100] sm:$0xf]
    %v807 = vld [vmem:[%s801 + $0x110] sm:$0xf]
    %v808 = vld [vmem:[%s801 + $0x120] sm:$0xf]
    %v809 = vld [vmem:[%s801 + $0x130] sm:$0xf]
    %v810 = vsel %vm398, %v802, -inf
    %v811 = vsel %vm398, %v803, -inf
    %v812 = vsel %vm398, %v804, -inf
    %v813 = vmax.f32 %v810, %v812
    %v814 = vsel %vm398, %v805, -inf
    %v815 = vmax.f32 %v811, %v814
    %v816 = vmax.f32 %v813, %v815
    %v817 = vrot.slane %v816, 4
    %v818 = vmax.f32 %v816, %v817
    %v819 = vrot.slane %v818, 2
    %v820 = vmax.f32 %v818, %v819
    %v821 = vrot.slane %v820, 1
    %v822 = vmax.f32 %v820, %v821
    %v823 = vsel %vm398, %v806, -inf
    %v824 = vsel %vm398, %v807, -inf
    %v825 = vsel %vm398, %v808, -inf
    %v826 = vmax.f32 %v823, %v825
    %v827 = vsel %vm398, %v809, -inf
    %v828 = vmax.f32 %v824, %v827
    %v829 = vmax.f32 %v826, %v828
    %v830 = vrot.slane %v829, 4
    %v831 = vmax.f32 %v829, %v830
    %v832 = vrot.slane %v831, 2
    %v833 = vmax.f32 %v831, %v832
    %v834 = vrot.slane %v833, 1
    %v835 = vmax.f32 %v833, %v834
    %v836 = vld [vmem:[%s801 + $0x4] sm:$0xf]
    %v837 = vld [vmem:[%s801 + $0x14] sm:$0xf]
    %v838 = vld [vmem:[%s801 + $0x24] sm:$0xf]
    %v839 = vld [vmem:[%s801 + $0x34] sm:$0xf]
    %v840 = vld [vmem:[%s801 + $0x104] sm:$0xf]
    %v841 = vld [vmem:[%s801 + $0x114] sm:$0xf]
    %v842 = vld [vmem:[%s801 + $0x124] sm:$0xf]
    %v843 = vld [vmem:[%s801 + $0x134] sm:$0xf]
    %v844 = vsel %vm398, %v836, -inf
    %v845 = vsel %vm398, %v837, -inf
    %v846 = vsel %vm398, %v838, -inf
    %v847 = vmax.f32 %v844, %v846
    %v848 = vsel %vm398, %v839, -inf
    %v849 = vmax.f32 %v845, %v848
    %v850 = vmax.f32 %v847, %v849
    %v851 = vrot.slane %v850, 4
    %v852 = vmax.f32 %v850, %v851
    %v853 = vrot.slane %v852, 2
    %v854 = vmax.f32 %v852, %v853
    %v855 = vrot.slane %v854, 1
    %v856 = vmax.f32 %v854, %v855
    %v857 = vsel %vm398, %v840, -inf
    %v858 = vsel %vm398, %v841, -inf
    %v859 = vsel %vm398, %v842, -inf
    %v860 = vmax.f32 %v857, %v859
    %v861 = vsel %vm398, %v843, -inf
    %v862 = vmax.f32 %v858, %v861
    %v863 = vmax.f32 %v860, %v862
    %v864 = vrot.slane %v863, 4
    %v865 = vmax.f32 %v863, %v864
    %v866 = vrot.slane %v865, 2
    %v867 = vmax.f32 %v865, %v866
    %v868 = vrot.slane %v867, 1
    %v869 = vmax.f32 %v867, %v868
    %v870 = vld [vmem:[%s801 + $0x8] sm:$0xf]
    %v871 = vld [vmem:[%s801 + $0x18] sm:$0xf]
    %v872 = vld [vmem:[%s801 + $0x28] sm:$0xf]
    %v873 = vld [vmem:[%s801 + $0x38] sm:$0xf]
    %v874 = vld [vmem:[%s801 + $0x108] sm:$0xf]
    %v875 = vld [vmem:[%s801 + $0x118] sm:$0xf]
    %v876 = vld [vmem:[%s801 + $0x128] sm:$0xf]
    %v877 = vld [vmem:[%s801 + $0x138] sm:$0xf]
    %v878 = vsel %vm398, %v870, -inf
    %v879 = vsel %vm398, %v871, -inf
    %v880 = vsel %vm398, %v872, -inf
    %v881 = vmax.f32 %v878, %v880
    %v882 = vsel %vm398, %v873, -inf
    %v883 = vmax.f32 %v879, %v882
    %v884 = vmax.f32 %v881, %v883
    %v885 = vrot.slane %v884, 4
    %v886 = vmax.f32 %v884, %v885
    %v887 = vrot.slane %v886, 2
    %v888 = vmax.f32 %v886, %v887
    %v889 = vrot.slane %v888, 1
    %v890 = vmax.f32 %v888, %v889
    %v891 = vsel %vm398, %v874, -inf
    %v892 = vsel %vm398, %v875, -inf
    %v893 = vsel %vm398, %v876, -inf
    %v894 = vmax.f32 %v891, %v893
    %v895 = vsel %vm398, %v877, -inf
    %v896 = vmax.f32 %v892, %v895
    %v897 = vmax.f32 %v894, %v896
    %v898 = vrot.slane %v897, 4
    %v899 = vmax.f32 %v897, %v898
    %v900 = vrot.slane %v899, 2
    %v901 = vmax.f32 %v899, %v900
    %v902 = vrot.slane %v901, 1
    %v903 = vmax.f32 %v901, %v902
    %v904 = vld [vmem:[%s801 + $0xc] sm:$0xf]
    %v905 = vld [vmem:[%s801 + $0x1c] sm:$0xf]
    %v906 = vld [vmem:[%s801 + $0x2c] sm:$0xf]
    %v907 = vld [vmem:[%s801 + $0x3c] sm:$0xf]
    %v908 = vld [vmem:[%s801 + $0x10c] sm:$0xf]
    %v909 = vld [vmem:[%s801 + $0x11c] sm:$0xf]
    %v910 = vld [vmem:[%s801 + $0x12c] sm:$0xf]
    %v911 = vld [vmem:[%s801 + $0x13c] sm:$0xf]
    %v912 = vsel %vm398, %v904, -inf
    %v913 = vsel %vm398, %v905, -inf
    %v914 = vsel %vm398, %v906, -inf
    %v915 = vmax.f32 %v912, %v914
    %v916 = vsel %vm398, %v907, -inf
    %v917 = vmax.f32 %v913, %v916
    %v918 = vmax.f32 %v915, %v917
    %v919 = vrot.slane %v918, 4
    %v920 = vmax.f32 %v918, %v919
    %v921 = vrot.slane %v920, 2
    %v922 = vmax.f32 %v920, %v921
    %v923 = vrot.slane %v922, 1
    %v924 = vmax.f32 %v922, %v923
    %v925 = vsel %vm398, %v908, -inf
    %v926 = vsel %vm398, %v909, -inf
    %v927 = vsel %vm398, %v910, -inf
    %v928 = vmax.f32 %v925, %v927
    %v929 = vsel %vm398, %v911, -inf
    %v930 = vmax.f32 %v926, %v929
    %v931 = vmax.f32 %v928, %v930
    %v932 = vrot.slane %v931, 4
    %v933 = vmax.f32 %v931, %v932
    %v934 = vrot.slane %v933, 2
    %v935 = vmax.f32 %v933, %v934
    %v936 = vrot.slane %v935, 1
    %v937 = vmax.f32 %v935, %v936
    %v938 = vmax.f32 %v411, %v445
    %v939 = vmax.f32 %v424, %v458
    %v940 = vmax.f32 %v938, %v479
    %v941 = vmax.f32 %v939, %v492
    %v942 = vmax.f32 %v940, %v513
    %v943 = vmax.f32 %v941, %v526
    %v944 = vmax.f32 %v942, %v548
    %v945 = vmax.f32 %v943, %v561
    %v946 = vmax.f32 %v944, %v582
    %v947 = vmax.f32 %v945, %v595
    %v948 = vmax.f32 %v946, %v616
    %v949 = vmax.f32 %v947, %v629
    %v950 = vmax.f32 %v948, %v650
    %v951 = vmax.f32 %v949, %v663
    %v952 = vmax.f32 %v950, %v685
    %v953 = vmax.f32 %v951, %v698
    %v954 = vmax.f32 %v952, %v719
    %v955 = vmax.f32 %v953, %v732
    %v956 = vmax.f32 %v954, %v753
    %v957 = vmax.f32 %v955, %v766
    %v958 = vmax.f32 %v956, %v787
    %v959 = vmax.f32 %v957, %v800
    %v960 = vmax.f32 %v958, %v822
    %v961 = vmax.f32 %v959, %v835
    %v962 = vmax.f32 %v960, %v856
    %v963 = vmax.f32 %v961, %v869
    %v964 = vmax.f32 %v962, %v890
    %v965 = vmax.f32 %v963, %v903
    %v966 = vmax.f32 %v964, %v924
    %v967 = vmax.f32 %v965, %v937
    %v968 = vmax.f32 %v938, %v548
    %v969 = vmax.f32 %v939, %v561
    %v970 = vmax.f32 %v968, %v582
    %v971 = vmax.f32 %v969, %v595
    %v972 = vmax.f32 %v479, %v513
    %v973 = vmax.f32 %v492, %v526
    %v974 = vmax.f32 %v972, %v616
    %v975 = vmax.f32 %v973, %v629
    %v976 = vmax.f32 %v974, %v650
    %v977 = vmax.f32 %v975, %v663
    %v978 = vmax.f32 %v685, %v719
    %v979 = vmax.f32 %v698, %v732
    %v980 = vmax.f32 %v978, %v822
    %v981 = vmax.f32 %v979, %v835
    %v982 = vmax.f32 %v980, %v856
    %v983 = vmax.f32 %v981, %v869
    %v984 = vmax.f32 %v753, %v787
    %v985 = vmax.f32 %v766, %v800
    %v986 = vmax.f32 %v984, %v890
    %v987 = vmax.f32 %v985, %v903
    %v988 = vmax.f32 %v986, %v924
    %v989 = vmax.f32 %v987, %v937
    %vm990 = vcmask 1040384
    %v991 = vsel %vm990, %v966, %v970
    %v992 = vsel %vm990, %v967, %v971
    %vm993 = vcmask 1041408
    %v994 = vsel %vm993, %v991, %v976
    %v995 = vsel %vm993, %v992, %v977
    %vm996 = vcmask 1042432
    %v997 = vsel %vm996, %v994, %v982
    %v998 = vsel %vm996, %v995, %v983
    %vm999 = vcmask 1043456
    %v1000 = vsel %vm999, %v997, %v988
    %v1001 = vsel %vm999, %v998, %v989
    %vm1002 = vcmask 1044480
    %v1003 = vsel %vm1002, %v1000, %v411
    %v1004 = vsel %vm1002, %v1001, %v424
    %vm1005 = vcmask 1045504
    %v1006 = vsel %vm1005, %v1003, %v445
    %v1007 = vsel %vm1005, %v1004, %v458
    %vm1008 = vcmask 1046528
    %v1009 = vsel %vm1008, %v1006, %v479
    %v1010 = vsel %vm1008, %v1007, %v492
    %v1011 = vsel %vm990, %v513, %v548
    %v1012 = vsel %vm990, %v526, %v561
    %v1013 = vsel %vm993, %v1011, %v582
    %v1014 = vsel %vm993, %v1012, %v595
    %v1015 = vsel %vm996, %v1013, %v616
    %v1016 = vsel %vm996, %v1014, %v629
    %v1017 = vsel %vm999, %v1015, %v650
    %v1018 = vsel %vm999, %v1016, %v663
    %v1019 = vsel %vm1002, %v1017, %v685
    %v1020 = vsel %vm1002, %v1018, %v698
    %v1021 = vsel %vm1005, %v1019, %v719
    %v1022 = vsel %vm1005, %v1020, %v732
    %v1023 = vsel %vm1008, %v1021, %v753
    %v1024 = vsel %vm1008, %v1022, %v766
    %v1025 = vsel %vm990, %v787, %v822
    %v1026 = vsel %vm990, %v800, %v835
    %v1027 = vsel %vm993, %v1025, %v856
    %v1028 = vsel %vm993, %v1026, %v869
    %v1029 = vsel %vm996, %v1027, %v890
    %v1030 = vsel %vm996, %v1028, %v903
    %v1031 = vsel %vm999, %v1029, %v924
    %v1032 = vsel %vm999, %v1030, %v937
    %vm1033 = vcmask 31744
    %1034 = vst.msk [vmem:[%s1] sm:$0xff] %vm1033, %v1009
    %1035 = vst.msk [vmem:[%s1 + $0x8] sm:$0xff] %vm1033, %v1023
    %vm1036 = vcmask 28672
    %1037 = vst.msk [vmem:[%s1 + $0x10] sm:$0x1f] %vm1036, %v1031
    %1038 = vst.msk [vmem:[%s1 + $0x18] sm:$0xff] %vm1033, %v1010
    %1039 = vst.msk [vmem:[%s1 + $0x20] sm:$0xff] %vm1033, %v1024
    %1040 = vst.msk [vmem:[%s1 + $0x28] sm:$0x1f] %vm1036, %v1032
    // Predicated region
    $region6: #{spatial_pyramid_pool.2} parent=1 // pred_check
      _
    $region7: #{spatial_pyramid_pool.2} parent=1 // pred_check_branch
      %1042 = sbr.rel (0) target = $region9
    $region8: #{spatial_pyramid_pool.2} parent=1 // pred_region
      _
    $region9: #{spatial_pyramid_pool.2} parent=1 // pred_fallthru
      _
    // Predicated region
    $region10: #{spatial_pyramid_pool.2} parent=1 // pred_check
      _
    $region11: #{spatial_pyramid_pool.2} parent=1 // pred_check_branch
      %1044 = sbr.rel (0) target = $region13
    $region12: #{spatial_pyramid_pool.2} parent=1 // pred_region
      _
    $region13: #{spatial_pyramid_pool.2} parent=1 // pred_fallthru
      _

</llo_original>
